<compile_context>
chip_gen: v6e
topology: v6e:2x2x1
jax: 0.10.0
libtpu: 0.0.40
codegen_flags: <defaults>
</compile_context>

<pallas_src>
import math
import jax
import jax.numpy as jnp
from jax import lax
from jax.experimental import pallas as pl
from jax.experimental.pallas import tpu as pltpu

DPAD = 128  # lane-dense feature width (pads in_dim=16 / emb_dim=32 up to 128)


def _gnn_node_fused_kernel(eps_ref, x0_ref, a_ref, nsl_ref,
                           w1_ref, c1_ref, w2_ref, c2_ref, o_ref):
    """All (num_layer-1) GraphSN layers fused in one kernel invocation."""
    L = w1_ref.shape[0]                       # static layer count
    a = a_ref[...]                            # [N, N]   bf16, resident
    nsl = nsl_ref[...]                        # [N, 1]   f32,  resident

    def layer_math(l, agg, self_term):
        # GraphSN.mlp (BN folded into W1/c1) + outer BN folded into W2/c2 + ReLU
        h = self_term + agg                                       # [N, DPAD] f32
        z = jnp.dot(h.astype(jnp.bfloat16), w1_ref[l],
                    preferred_element_type=jnp.float32) + c1_ref[l]
        z = jnp.maximum(z, 0.0)
        z = jnp.dot(z.astype(jnp.bfloat16), w2_ref[l],
                    preferred_element_type=jnp.float32) + c2_ref[l]
        return jnp.maximum(z, 0.0)                                # f32

    # ---- layer 0: raw x0 feeds the self term, relu(x0) feeds aggregation ----
    x0 = x0_ref[...]                                              # [N, DPAD] f32
    rx0 = jnp.maximum(x0, 0.0).astype(jnp.bfloat16)
    agg0 = jnp.dot(a, rx0, preferred_element_type=jnp.float32)
    xf = layer_math(0, agg0, (eps_ref[0] * nsl) * x0)
    # post-loop `node_repr += x` double-counts the last layer; fold it in here
    # when there is only a single layer.
    node_repr = xf * (jnp.float32(2.0) if L == 1 else jnp.float32(1.0))
    x_bf = xf.astype(jnp.bfloat16)                                # bf16 carry

    # ---- layers 1 .. L-1: x already ReLU'd, carried in bf16 ----
    def body(l, carry):
        x_bf, node_repr = carry
        agg = jnp.dot(a, x_bf, preferred_element_type=jnp.float32)
        self_term = (eps_ref[l] * nsl) * x_bf.astype(jnp.float32)
        xf = layer_math(l, agg, self_term)
        scale = jnp.where(l == L - 1, jnp.float32(2.0), jnp.float32(1.0))
        return xf.astype(jnp.bfloat16), node_repr + xf * scale

    if L > 1:
        _, node_repr = lax.fori_loop(1, L, body, (x_bf, node_repr), unroll=True)

    o_ref[...] = node_repr


def _fold_and_pad_params(layer_params, num_layer, emb_dim):
    """Fold eval-mode BN affines into the Linear weights, zero-pad the feature
    axes to DPAD lanes and stack the per-layer arrays along a leading L axis."""
    L = num_layer - 1
    w1s, c1s, w2s, c2s, eps = [], [], [], [], []
    for l in range(L):
        p = layer_params[l]
        din = p["w1"].shape[0]
        w1f = p["w1"] * p["s1"]                  # BN1 scale into W1 columns
        c1 = p["b1"] * p["s1"] + p["t1"]         # BN1 shift into bias
        w2f = p["w2"] * p["so"]                  # outer-BN scale into W2
        c2 = p["b2"] * p["so"] + p["to"]
        w1s.append(jnp.zeros((DPAD, DPAD), jnp.float32)
                   .at[:din, :emb_dim].set(w1f))
        w2s.append(jnp.zeros((DPAD, DPAD), jnp.float32)
                   .at[:emb_dim, :emb_dim].set(w2f))
        c1s.append(jnp.zeros((1, DPAD), jnp.float32).at[:, :emb_dim].set(c1))
        c2s.append(jnp.zeros((1, DPAD), jnp.float32).at[:, :emb_dim].set(c2))
        eps.append(p["eps"])
    return dict(
        W1=jnp.stack(w1s).astype(jnp.bfloat16),   # [L, DPAD, DPAD] bf16
        C1=jnp.stack(c1s),                        # [L, 1, DPAD]    f32
        W2=jnp.stack(w2s).astype(jnp.bfloat16),   # [L, DPAD, DPAD] bf16
        C2=jnp.stack(c2s),                        # [L, 1, DPAD]    f32
        EPS=jnp.stack(eps).astype(jnp.float32),   # [L]             f32 (SMEM)
    )


def gnn_node_forward(x, A, norm_self_loop, layer_params, num_layer):
    """GNN_node.forward (eval mode) — a single gridless pallas_call fusing all
    (num_layer - 1) GraphSN layers."""
    N, in_dim = x.shape
    emb_dim = layer_params[0]["w1"].shape[1]

    fp = _fold_and_pad_params(layer_params, num_layer, emb_dim)
    x0p = jnp.zeros((N, DPAD), jnp.float32).at[:, :in_dim].set(x)
    A_bf16 = A.astype(jnp.bfloat16)
    nsl = norm_self_loop.reshape(N, 1).astype(jnp.float32)

    vmem = lambda: pl.BlockSpec(memory_space=pltpu.MemorySpace.VMEM)

    out = pl.pallas_call(
        _gnn_node_fused_kernel,
        out_shape=jax.ShapeDtypeStruct((N, DPAD), jnp.float32),
        in_specs=[
            pl.BlockSpec(memory_space=pltpu.MemorySpace.SMEM),   # eps [L]
            vmem(),                                              # x0 [N, DPAD]
            vmem(),                                              # A  [N, N]
            vmem(),                                              # norm_self_loop
            vmem(),                                              # W1 stack
            vmem(),                                              # C1 stack
            vmem(),                                              # W2 stack
            vmem(),                                              # C2 stack
        ],
        out_specs=vmem(),                                        # node_repr
        compiler_params=pltpu.CompilerParams(
            # raise when scaling N (resident A = 2*N^2 bytes bf16)
            vmem_limit_bytes=32 * 1024 * 1024),
    )(fp["EPS"], x0p, A_bf16, nsl, fp["W1"], fp["C1"], fp["W2"], fp["C2"])
    return out[:, :emb_dim]


def gnn_node_reference(x, A, norm_self_loop, layer_params, num_layer):
    """Pure-JAX mirror of the fused kernel math (same BN fold, bf16 operands /
    bf16 activation carry, f32 accumulation) used for a numerical check."""
    emb_dim = layer_params[0]["w1"].shape[1]
    L = num_layer - 1
    fp = _fold_and_pad_params(layer_params, num_layer, emb_dim)
    N, in_dim = x.shape
    xp = jnp.zeros((N, DPAD), jnp.float32).at[:, :in_dim].set(x)
    Ab = A.astype(jnp.bfloat16)
    nsl = norm_self_loop.reshape(N, 1).astype(jnp.float32)

    def layer_math(l, agg, self_term):
        z = jnp.dot((self_term + agg).astype(jnp.bfloat16), fp["W1"][l],
                    preferred_element_type=jnp.float32) + fp["C1"][l]
        z = jnp.maximum(z, 0.0)
        z = jnp.dot(z.astype(jnp.bfloat16), fp["W2"][l],
                    preferred_element_type=jnp.float32) + fp["C2"][l]
        return jnp.maximum(z, 0.0)

    # layer 0
    rx0 = jnp.maximum(xp, 0.0).astype(jnp.bfloat16)
    agg0 = jnp.dot(Ab, rx0, preferred_element_type=jnp.float32)
    xf = layer_math(0, agg0, (fp["EPS"][0] * nsl) * xp)
    node_repr = xf
    x_bf = xf.astype(jnp.bfloat16)
    for l in range(1, L):
        agg = jnp.dot(Ab, x_bf, preferred_element_type=jnp.float32)
        xf = layer_math(l, agg, (fp["EPS"][l] * nsl) * x_bf.astype(jnp.float32))
        node_repr = node_repr + xf
        x_bf = xf.astype(jnp.bfloat16)
    node_repr = node_repr + xf          # last layer's output counted twice
    return node_repr[:, :emb_dim]


def _fold_bn(gamma, beta, mean, var, eps=1e-5):
    scale = gamma * jax.lax.rsqrt(var + eps)
    shift = beta - mean * scale
    return scale.reshape(1, -1), shift.reshape(1, -1)


def init_params(key, num_layer, in_dim, emb_dim):
    """Deterministic synthetic parameters for every layer of the module."""
    params = []
    for layer in range(num_layer):
        din = in_dim if layer == 0 else emb_dim
        key, *ks = jax.random.split(key, 11)
        # GraphSN.mlp Linear weights stored as (in, out) for x @ W
        w1 = (jax.random.normal(ks[0], (din, emb_dim), jnp.float32)
              / math.sqrt(din))
        b1 = jax.random.normal(ks[1], (1, emb_dim), jnp.float32) * 0.05
        w2 = (jax.random.normal(ks[2], (emb_dim, emb_dim), jnp.float32)
              / math.sqrt(emb_dim))
        b2 = jax.random.normal(ks[3], (1, emb_dim), jnp.float32) * 0.05
        # BN inside the mlp (eval-mode running stats)
        g1 = 1.0 + 0.1 * jax.random.normal(ks[4], (emb_dim,), jnp.float32)
        be1 = 0.05 * jax.random.normal(ks[5], (emb_dim,), jnp.float32)
        m1 = 0.05 * jax.random.normal(ks[6], (emb_dim,), jnp.float32)
        v1 = 1.0 + 0.1 * jnp.abs(jax.random.normal(ks[7], (emb_dim,), jnp.float32))
        s1, t1 = _fold_bn(g1, be1, m1, v1)
        # GNN_node outer BatchNorm1d (eval-mode running stats)
        go = 1.0 + 0.1 * jax.random.normal(ks[8], (emb_dim,), jnp.float32)
        beo = 0.05 * jax.random.normal(ks[9], (emb_dim,), jnp.float32)
        mo = jnp.zeros((emb_dim,), jnp.float32)
        vo = jnp.ones((emb_dim,), jnp.float32)
        so, to = _fold_bn(go, beo, mo, vo)
        # eps parameter: value set by reset_parameters -> 0.1 / sqrt(1)
        params.append(dict(w1=w1, b1=b1, s1=s1, t1=t1,
                           w2=w2, b2=b2, so=so, to=to,
                           eps=jnp.float32(0.1)))
    return params


if __name__ == "__main__":
    key = jax.random.PRNGKey(0)
    N, num_edges = 32, 96
    in_dim, emb_dim, num_layer = 16, 32, 3

    k_x, k_src, k_dst, k_w, k_sl, k_p = jax.random.split(key, 6)
    x = jax.random.normal(k_x, (N, in_dim), jnp.float32)
    src = jax.random.randint(k_src, (num_edges,), 0, N)          # x_j index
    dst = jax.random.randint(k_dst, (num_edges,), 0, N)          # target node
    norm_edge_weight = jax.random.uniform(k_w, (num_edges,),
                                          jnp.float32, 0.1, 1.0)
    norm_self_loop = jax.random.uniform(k_sl, (N,), jnp.float32, 0.5, 1.5)

    # Densify the graph (glue): A[i, j] = sum of weights of edges j -> i.
    A = jnp.zeros((N, N), jnp.float32).at[dst, src].add(norm_edge_weight)

    layer_params = init_params(k_p, num_layer, in_dim, emb_dim)

    out = gnn_node_forward(x, A, norm_self_loop, layer_params, num_layer)
    out = jax.block_until_ready(out)
    assert out.shape == (N, emb_dim) and out.dtype == jnp.float32
    assert bool(jnp.all(jnp.isfinite(out)))

    ref = gnn_node_reference(x, A, norm_self_loop, layer_params, num_layer)
    assert bool(jnp.allclose(out, ref, rtol=5e-3, atol=5e-3))

    print("KERNEL_OK")
</pallas_src>

<mosaic_0001>
module attributes {stable_mosaic.version = 11 : i64} {
  func.func @_gnn_node_fused_kernel(%arg0: memref<2xf32, #tpu.memory_space<smem>>, %arg1: memref<32x128xf32, #tpu.memory_space<vmem>>, %arg2: memref<32x32xbf16, #tpu.memory_space<vmem>>, %arg3: memref<32x1xf32, #tpu.memory_space<vmem>>, %arg4: memref<2x128x128xbf16, #tpu.memory_space<vmem>>, %arg5: memref<2x1x128xf32, #tpu.memory_space<vmem>>, %arg6: memref<2x128x128xbf16, #tpu.memory_space<vmem>>, %arg7: memref<2x1x128xf32, #tpu.memory_space<vmem>>, %arg8: memref<32x128xf32, #tpu.memory_space<vmem>>) attributes {dimension_semantics = [], scalar_prefetch = 0 : i64, scratch_operands = 0 : i64, tpu.core_type = #tpu.core_type<tc>} {
    %c0 = arith.constant 0 : index
    %c0_0 = arith.constant 0 : index
    %0 = vector.load %arg2[%c0, %c0_0] : memref<32x32xbf16, #tpu.memory_space<vmem>>, vector<32x32xbf16>
    %c0_1 = arith.constant 0 : index
    %c0_2 = arith.constant 0 : index
    %1 = vector.load %arg3[%c0_1, %c0_2] : memref<32x1xf32, #tpu.memory_space<vmem>>, vector<32x1xf32>
    %c0_3 = arith.constant 0 : index
    %c0_4 = arith.constant 0 : index
    %2 = vector.load %arg1[%c0_3, %c0_4] : memref<32x128xf32, #tpu.memory_space<vmem>>, vector<32x128xf32>
    %cst = arith.constant 0.000000e+00 : f32
    %3 = vector.broadcast %cst : f32 to vector<32x128xf32>
    %4 = arith.maximumf %2, %3 : vector<32x128xf32>
    %5 = arith.truncf %4 : vector<32x128xf32> to vector<32x128xbf16>
    %cst_5 = arith.constant dense<0.000000e+00> : vector<32x128xf32>
    %6 = tpu.matmul %0, %5, %cst_5 {dimension_numbers = #tpu.dot_dimension_numbers<[1], [0], [0], [1], [0, 0, 1, 1], [], []>} : vector<32x32xbf16>, vector<32x128xbf16>, vector<32x128xf32> -> vector<32x128xf32>
    %c0_6 = arith.constant 0 : index
    %7 = memref.load %arg0[%c0_6] : memref<2xf32, #tpu.memory_space<smem>>
    %8 = vector.broadcast %7 : f32 to vector<32x1xf32>
    %9 = arith.mulf %8, %1 : vector<32x1xf32>
    %10 = vector.broadcast %9 : vector<32x1xf32> to vector<32x128xf32>
    %11 = arith.mulf %10, %2 : vector<32x128xf32>
    %12 = arith.addf %11, %6 : vector<32x128xf32>
    %13 = arith.truncf %12 : vector<32x128xf32> to vector<32x128xbf16>
    %c0_7 = arith.constant 0 : index
    %c0_8 = arith.constant 0 : index
    %c0_9 = arith.constant 0 : index
    %14 = vector.load %arg4[%c0_7, %c0_8, %c0_9] : memref<2x128x128xbf16, #tpu.memory_space<vmem>>, vector<1x128x128xbf16>
    %15 = vector.shape_cast %14 : vector<1x128x128xbf16> to vector<128x128xbf16>
    %cst_10 = arith.constant dense<0.000000e+00> : vector<32x128xf32>
    %16 = tpu.matmul %13, %15, %cst_10 {dimension_numbers = #tpu.dot_dimension_numbers<[1], [0], [0], [1], [0, 0, 1, 1], [], []>} : vector<32x128xbf16>, vector<128x128xbf16>, vector<32x128xf32> -> vector<32x128xf32>
    %c0_11 = arith.constant 0 : index
    %c0_12 = arith.constant 0 : index
    %c0_13 = arith.constant 0 : index
    %17 = vector.load %arg5[%c0_11, %c0_12, %c0_13] : memref<2x1x128xf32, #tpu.memory_space<vmem>>, vector<1x1x128xf32>
    %18 = vector.shape_cast %17 : vector<1x1x128xf32> to vector<1x128xf32>
    %19 = vector.broadcast %18 : vector<1x128xf32> to vector<32x128xf32>
    %20 = arith.addf %16, %19 : vector<32x128xf32>
    %cst_14 = arith.constant 0.000000e+00 : f32
    %21 = vector.broadcast %cst_14 : f32 to vector<32x128xf32>
    %22 = arith.maximumf %20, %21 : vector<32x128xf32>
    %23 = arith.truncf %22 : vector<32x128xf32> to vector<32x128xbf16>
    %c0_15 = arith.constant 0 : index
    %c0_16 = arith.constant 0 : index
    %c0_17 = arith.constant 0 : index
    %24 = vector.load %arg6[%c0_15, %c0_16, %c0_17] : memref<2x128x128xbf16, #tpu.memory_space<vmem>>, vector<1x128x128xbf16>
    %25 = vector.shape_cast %24 : vector<1x128x128xbf16> to vector<128x128xbf16>
    %cst_18 = arith.constant dense<0.000000e+00> : vector<32x128xf32>
    %26 = tpu.matmul %23, %25, %cst_18 {dimension_numbers = #tpu.dot_dimension_numbers<[1], [0], [0], [1], [0, 0, 1, 1], [], []>} : vector<32x128xbf16>, vector<128x128xbf16>, vector<32x128xf32> -> vector<32x128xf32>
    %c0_19 = arith.constant 0 : index
    %c0_20 = arith.constant 0 : index
    %c0_21 = arith.constant 0 : index
    %27 = vector.load %arg7[%c0_19, %c0_20, %c0_21] : memref<2x1x128xf32, #tpu.memory_space<vmem>>, vector<1x1x128xf32>
    %28 = vector.shape_cast %27 : vector<1x1x128xf32> to vector<1x128xf32>
    %29 = vector.broadcast %28 : vector<1x128xf32> to vector<32x128xf32>
    %30 = arith.addf %26, %29 : vector<32x128xf32>
    %cst_22 = arith.constant 0.000000e+00 : f32
    %31 = vector.broadcast %cst_22 : f32 to vector<32x128xf32>
    %32 = arith.maximumf %30, %31 : vector<32x128xf32>
    %cst_23 = arith.constant 1.000000e+00 : f32
    %33 = vector.broadcast %cst_23 : f32 to vector<32x128xf32>
    %34 = arith.mulf %32, %33 : vector<32x128xf32>
    %35 = arith.truncf %32 : vector<32x128xf32> to vector<32x128xbf16>
    %c1_i32 = arith.constant 1 : i32
    %cst_24 = arith.constant dense<0.000000e+00> : vector<32x128xf32>
    %36 = tpu.matmul %0, %35, %cst_24 {dimension_numbers = #tpu.dot_dimension_numbers<[1], [0], [0], [1], [0, 0, 1, 1], [], []>} : vector<32x32xbf16>, vector<32x128xbf16>, vector<32x128xf32> -> vector<32x128xf32>
    %37 = arith.index_cast %c1_i32 : i32 to index
    %38 = memref.load %arg0[%37] : memref<2xf32, #tpu.memory_space<smem>>
    %39 = vector.broadcast %38 : f32 to vector<32x1xf32>
    %40 = arith.mulf %39, %1 : vector<32x1xf32>
    %41 = arith.extf %35 : vector<32x128xbf16> to vector<32x128xf32>
    %42 = vector.broadcast %40 : vector<32x1xf32> to vector<32x128xf32>
    %43 = arith.mulf %42, %41 : vector<32x128xf32>
    %44 = arith.addf %43, %36 : vector<32x128xf32>
    %45 = arith.truncf %44 : vector<32x128xf32> to vector<32x128xbf16>
    %46 = arith.index_cast %c1_i32 : i32 to index
    %c0_25 = arith.constant 0 : index
    %c0_26 = arith.constant 0 : index
    %47 = vector.load %arg4[%46, %c0_25, %c0_26] : memref<2x128x128xbf16, #tpu.memory_space<vmem>>, vector<1x128x128xbf16>
    %48 = vector.shape_cast %47 : vector<1x128x128xbf16> to vector<128x128xbf16>
    %cst_27 = arith.constant dense<0.000000e+00> : vector<32x128xf32>
    %49 = tpu.matmul %45, %48, %cst_27 {dimension_numbers = #tpu.dot_dimension_numbers<[1], [0], [0], [1], [0, 0, 1, 1], [], []>} : vector<32x128xbf16>, vector<128x128xbf16>, vector<32x128xf32> -> vector<32x128xf32>
    %50 = arith.index_cast %c1_i32 : i32 to index
    %c0_28 = arith.constant 0 : index
    %c0_29 = arith.constant 0 : index
    %51 = vector.load %arg5[%50, %c0_28, %c0_29] : memref<2x1x128xf32, #tpu.memory_space<vmem>>, vector<1x1x128xf32>
    %52 = vector.shape_cast %51 : vector<1x1x128xf32> to vector<1x128xf32>
    %53 = vector.broadcast %52 : vector<1x128xf32> to vector<32x128xf32>
    %54 = arith.addf %49, %53 : vector<32x128xf32>
    %cst_30 = arith.constant 0.000000e+00 : f32
    %55 = vector.broadcast %cst_30 : f32 to vector<32x128xf32>
    %56 = arith.maximumf %54, %55 : vector<32x128xf32>
    %57 = arith.truncf %56 : vector<32x128xf32> to vector<32x128xbf16>
    %58 = arith.index_cast %c1_i32 : i32 to index
    %c0_31 = arith.constant 0 : index
    %c0_32 = arith.constant 0 : index
    %59 = vector.load %arg6[%58, %c0_31, %c0_32] : memref<2x128x128xbf16, #tpu.memory_space<vmem>>, vector<1x128x128xbf16>
    %60 = vector.shape_cast %59 : vector<1x128x128xbf16> to vector<128x128xbf16>
    %cst_33 = arith.constant dense<0.000000e+00> : vector<32x128xf32>
    %61 = tpu.matmul %57, %60, %cst_33 {dimension_numbers = #tpu.dot_dimension_numbers<[1], [0], [0], [1], [0, 0, 1, 1], [], []>} : vector<32x128xbf16>, vector<128x128xbf16>, vector<32x128xf32> -> vector<32x128xf32>
    %62 = arith.index_cast %c1_i32 : i32 to index
    %c0_34 = arith.constant 0 : index
    %c0_35 = arith.constant 0 : index
    %63 = vector.load %arg7[%62, %c0_34, %c0_35] : memref<2x1x128xf32, #tpu.memory_space<vmem>>, vector<1x1x128xf32>
    %64 = vector.shape_cast %63 : vector<1x1x128xf32> to vector<1x128xf32>
    %65 = vector.broadcast %64 : vector<1x128xf32> to vector<32x128xf32>
    %66 = arith.addf %61, %65 : vector<32x128xf32>
    %cst_36 = arith.constant 0.000000e+00 : f32
    %67 = vector.broadcast %cst_36 : f32 to vector<32x128xf32>
    %68 = arith.maximumf %66, %67 : vector<32x128xf32>
    %c1_i32_37 = arith.constant 1 : i32
    %69 = arith.cmpi eq, %c1_i32, %c1_i32_37 : i32
    %cst_38 = arith.constant 2.000000e+00 : f32
    %cst_39 = arith.constant 1.000000e+00 : f32
    %70 = arith.select %69, %cst_38, %cst_39 : f32
    %71 = arith.truncf %68 : vector<32x128xf32> to vector<32x128xbf16>
    %72 = vector.broadcast %70 : f32 to vector<32x128xf32>
    %73 = arith.mulf %68, %72 : vector<32x128xf32>
    %74 = arith.addf %34, %73 : vector<32x128xf32>
    %c1_i32_40 = arith.constant 1 : i32
    %c0_41 = arith.constant 0 : index
    %c0_42 = arith.constant 0 : index
    %75 = vector.load %arg8[%c0_41, %c0_42] : memref<32x128xf32, #tpu.memory_space<vmem>>, vector<32x128xf32>
    tpu.vector_store %arg8[%c0_41, %c0_42], %74 {strides = array<i32>} : memref<32x128xf32, #tpu.memory_space<vmem>>, vector<32x128xf32>,
    return
  }
}

</mosaic_0001>

<llo_original>
// kernel: tpu_custom_call.1
$region0: #{tpu_custom_call.1}
  #allocation0 [shape = 'u32[]', space=smem, size = 0x4, offset = 0x4, fixed_abs, tag = 'smem constant byte address 0x4 - core index']
  #allocation1 [shape = 'u32[144,128]{1,0:T(1,128)}', space=vmem, size = 0x12000, scoped, tag = 'internal scratch']
  %s0 = inlined_call_operand.hbm [shape: f32[2], index: 0, kind: input, shape index: {}]
  %s1 = inlined_call_operand.vmem [shape: f32[32,128], index: 1, kind: input, shape index: {}]
  %s2 = inlined_call_operand.hbm [shape: bf16[32,32], index: 2, kind: input, shape index: {}]
  %s3 = inlined_call_operand.vmem [shape: f32[32,1], index: 3, kind: input, shape index: {}]
  %s4 = inlined_call_operand.hbm [shape: bf16[2,128,128], index: 4, kind: input, shape index: {}]
  %s5 = inlined_call_operand.vmem [shape: f32[2,1,128], index: 5, kind: input, shape index: {}]
  %s6 = inlined_call_operand.hbm [shape: bf16[2,128,128], index: 6, kind: input, shape index: {}]
  %s7 = inlined_call_operand.vmem [shape: f32[2,1,128], index: 7, kind: input, shape index: {}]
  %s8 = inlined_call_operand.hbm [shape: f32[32,128], index: 8, kind: output, shape index: {}]
  %s9 = sld [smem:[#allocation0]]
  $region58: #{tpu_custom_call.1} parent=0
    _
  %s11 = ssub.s32 1, %s9
  %s12 = scalar_select 0, %s11, %s9
  $region1: #{tpu_custom_call.1} parent=0
    #allocation2 [shape = 'u8[512]{0}', space=smem, size = 0x200, scoped, tag = 'input window, operand 0, single buffered']
    #allocation3 [shape = 's32[1]{0}', space=sflag, size = 0x4, scoped, tag = 'scoped memory for tpu_custom_call.1']
    #allocation4 [shape = 's32[1]{0}', space=sflag, size = 0x4, scoped, tag = 'scoped memory for tpu_custom_call.1']
    #allocation5 [shape = 's32[1]{0}', space=sflag, size = 0x4, scoped, tag = 'scoped memory for tpu_custom_call.1']
    #allocation6 [shape = 'u8[8192]{0}', space=vmem, size = 0x2000, scoped, tag = 'input window, operand 2, single buffered']
    #allocation7 [shape = 'u8[65536]{0}', space=vmem, size = 0x10000, scoped, tag = 'input window, operand 4, single buffered']
    #allocation8 [shape = 's32[1]{0}', space=sflag, size = 0x4, scoped, tag = 'scoped memory for tpu_custom_call.1']
    #allocation9 [shape = 'u8[65536]{0}', space=vmem, size = 0x10000, scoped, tag = 'input window, operand 6, single buffered']
    #allocation10 [shape = 'u8[16384]{0}', space=vmem, size = 0x4000, scoped, tag = 'output window, operand 0, single buffered']
    %13 = vsyncpa [#allocation5], 0
    %14 = vsyncpa [#allocation3], 0
    %15 = vsyncpa [#allocation8], 0
    %16 = vsyncpa [#allocation4], 0
    // Predicated region
    $region2: #{tpu_custom_call.1} parent=1 // pred_check
      _
    $region3: #{tpu_custom_call.1} parent=1 // pred_check_branch
      %18 = sbr.rel (0) target = $region5
    $region4: #{tpu_custom_call.1} parent=1 // pred_region
      %s20 = ssub.s32 16, 16
      %21 = vsyncadd [#allocation5], %s20
      %24 = dma.hbm_to_smem %s0, 16, [#allocation2], [#allocation5]
    $region5: #{tpu_custom_call.1} parent=1 // pred_fallthru
      _
    // Predicated region
    $region6: #{tpu_custom_call.1} parent=1 // pred_check
      _
    $region7: #{tpu_custom_call.1} parent=1 // pred_check_branch
      %26 = sbr.rel (0) target = $region9
    $region8: #{tpu_custom_call.1} parent=1 // pred_region
      _
    $region9: #{tpu_custom_call.1} parent=1 // pred_fallthru
      _
    // Predicated region
    $region10: #{tpu_custom_call.1} parent=1 // pred_check
      _
    $region11: #{tpu_custom_call.1} parent=1 // pred_check_branch
      %28 = sbr.rel (0) target = $region13
    $region12: #{tpu_custom_call.1} parent=1 // pred_region
      %s30 = ssub.s32 256, 256
      %31 = vsyncadd [#allocation3], %s30
      %s32 = sshll.u32 [#allocation6], 4
      %s33 = int_to_ptr.vmem [resolvable:$true] %s32
      %38 = dma.hbm_to_vmem [thread:$0]  %s2, 256, %s33, [#allocation3], 64, 64, 4
    $region13: #{tpu_custom_call.1} parent=1 // pred_fallthru
      _
    // Predicated region
    $region14: #{tpu_custom_call.1} parent=1 // pred_check
      _
    $region15: #{tpu_custom_call.1} parent=1 // pred_check_branch
      %40 = sbr.rel (0) target = $region17
    $region16: #{tpu_custom_call.1} parent=1 // pred_region
      _
    $region17: #{tpu_custom_call.1} parent=1 // pred_fallthru
      _
    // Predicated region
    $region18: #{tpu_custom_call.1} parent=1 // pred_check
      _
    $region19: #{tpu_custom_call.1} parent=1 // pred_check_branch
      %42 = sbr.rel (0) target = $region21
    $region20: #{tpu_custom_call.1} parent=1 // pred_region
      %s44 = ssub.s32 2048, 2048
      %45 = vsyncadd [#allocation8], %s44
      %s46 = sshll.u32 [#allocation7], 4
      %s47 = int_to_ptr.vmem [resolvable:$true] %s46
      %52 = dma.hbm_to_vmem [thread:$0]  %s4, 2048, %s47, [#allocation8], 64, 64, 4
    $region21: #{tpu_custom_call.1} parent=1 // pred_fallthru
      _
    // Predicated region
    $region22: #{tpu_custom_call.1} parent=1 // pred_check
      _
    $region23: #{tpu_custom_call.1} parent=1 // pred_check_branch
      %54 = sbr.rel (0) target = $region25
    $region24: #{tpu_custom_call.1} parent=1 // pred_region
      _
    $region25: #{tpu_custom_call.1} parent=1 // pred_fallthru
      _
    // Predicated region
    $region26: #{tpu_custom_call.1} parent=1 // pred_check
      _
    $region27: #{tpu_custom_call.1} parent=1 // pred_check_branch
      %56 = sbr.rel (0) target = $region29
    $region28: #{tpu_custom_call.1} parent=1 // pred_region
      %s58 = ssub.s32 2048, 2048
      %59 = vsyncadd [#allocation8], %s58
      %s60 = sshll.u32 [#allocation9], 4
      %s61 = int_to_ptr.vmem [resolvable:$true] %s60
      %66 = dma.hbm_to_vmem [thread:$0]  %s6, 2048, %s61, [#allocation8], 64, 64, 4
    $region29: #{tpu_custom_call.1} parent=1 // pred_fallthru
      _
    // Predicated region
    $region30: #{tpu_custom_call.1} parent=1 // pred_check
      _
    $region31: #{tpu_custom_call.1} parent=1 // pred_check_branch
      %68 = sbr.rel (0) target = $region33
    $region32: #{tpu_custom_call.1} parent=1 // pred_region
      _
    $region33: #{tpu_custom_call.1} parent=1 // pred_fallthru
      _
    // Predicated region
    $region34: #{tpu_custom_call.1} parent=1 // pred_check
      _
    $region35: #{tpu_custom_call.1} parent=1 // pred_check_branch
      %70 = sbr.rel (0) target = $region37
    $region36: #{tpu_custom_call.1} parent=1 // pred_region
      %71 = dma.done [#allocation5], 16
    $region37: #{tpu_custom_call.1} parent=1 // pred_fallthru
      _
    // Predicated region
    $region38: #{tpu_custom_call.1} parent=1 // pred_check
      _
    $region39: #{tpu_custom_call.1} parent=1 // pred_check_branch
      %73 = sbr.rel (0) target = $region41
    $region40: #{tpu_custom_call.1} parent=1 // pred_region
      %74 = dma.done [#allocation3], 256
    $region41: #{tpu_custom_call.1} parent=1 // pred_fallthru
      _
    // Predicated region
    $region42: #{tpu_custom_call.1} parent=1 // pred_check
      _
    $region43: #{tpu_custom_call.1} parent=1 // pred_check_branch
      %76 = sbr.rel (0) target = $region45
    $region44: #{tpu_custom_call.1} parent=1 // pred_region
      %77 = dma.done [#allocation8], 2048
    $region45: #{tpu_custom_call.1} parent=1 // pred_fallthru
      _
    // Predicated region
    $region46: #{tpu_custom_call.1} parent=1 // pred_check
      _
    $region47: #{tpu_custom_call.1} parent=1 // pred_check_branch
      %79 = sbr.rel (0) target = $region49
    $region48: #{tpu_custom_call.1} parent=1 // pred_region
      %80 = dma.done [#allocation8], 2048
    $region49: #{tpu_custom_call.1} parent=1 // pred_fallthru
      _
    %81 = sfence
    %v83 = vld [vmem:[#allocation6] sm:$0xf]
    %v84 = vld [vmem:[#allocation6 + $0x4] sm:$0xf]
    %v85 = vld [vmem:[#allocation6 + $0x8] sm:$0xf]
    %v86 = vld [vmem:[#allocation6 + $0xc] sm:$0xf]
    %v87 = vld [vmem:[%s3] sm:$0xff]
    %v88 = vld [vmem:[%s3 + $0x8] sm:$0xff]
    %v89 = vld [vmem:[%s3 + $0x10] sm:$0xff]
    %v90 = vld [vmem:[%s3 + $0x18] sm:$0xff]
    %v91 = vld [vmem:[%s1] sm:$0xff]
    %v92 = vld [vmem:[%s1 + $0x8] sm:$0xff]
    %v93 = vld [vmem:[%s1 + $0x10] sm:$0xff]
    %v94 = vld [vmem:[%s1 + $0x18] sm:$0xff]
    %v95 = vmax.f32 %v91, 0.0
    %v96 = vmax.f32 %v92, 0.0
    %v97 = vmax.f32 %v93, 0.0
    %v98 = vmax.f32 %v94, 0.0
    %v99 = vpack.c.bf16 %v96, %v95
    %v100 = vpack.c.bf16 %v98, %v97
    %v105 = vunpack.c.l.b16 %v83
    %v106 = vunpack.c.l.b16 %v84
    %v107 = vunpack.c.l.b16 %v85
    %v108 = vunpack.c.l.b16 %v86
    %v109 = vpack.c.b16 %v106, %v105
    %v110 = vpack.c.b16 %v108, %v107
    %vm111 = vcmask 261120
    %v113 = vsel %vm111, %v109, 0
    %v116 = vsel %vm111, %v110, 0
    %118 = vmatprep.subr.bf16.mxu0 0
    %119 = vmatpush1.bf16.msra.mxu0 0
    %120 = vmatprep.subr.bf16.mxu0 0
    %121 = vmatpush1.bf16.msra.mxu0 0
    %122 = vmatprep.subr.bf16.mxu0 0
    %123 = vmatpush1.bf16.msra.mxu0 0
    %124 = vmatprep.subr.bf16.mxu0 0
    %125 = vmatpush1.bf16.msra.mxu0 0
    %126 = vmatprep.subr.bf16.mxu0 0
    %127 = vmatpush1.bf16.msra.mxu0 0
    %128 = vmatprep.subr.bf16.mxu0 0
    %129 = vmatpush1.bf16.msra.mxu0 0
    %130 = vmatprep.subr.bf16.mxu0 0
    %131 = vmatpush1.bf16.msra.mxu0 %v100
    %132 = vmatprep.subr.bf16.mxu0 0
    %133 = vmatpush1.bf16.msra.mxu0 %v99
    %134 = vmatprep.subr.bf16.mxu0 0
    %135 = vmatpush2.bf16.msra.mxu0 0
    %136 = vmatprep.subr.bf16.mxu0 0
    %137 = vmatpush2.bf16.msra.mxu0 0
    %138 = vmatprep.subr.bf16.mxu0 0
    %139 = vmatpush2.bf16.msra.mxu0 0
    %140 = vmatprep.subr.bf16.mxu0 0
    %141 = vmatpush2.bf16.msra.mxu0 0
    %142 = vmatprep.subr.bf16.mxu0 0
    %143 = vmatpush2.bf16.msra.mxu0 0
    %144 = vmatprep.subr.bf16.mxu0 0
    %145 = vmatpush2.bf16.msra.mxu0 0
    %146 = vmatprep.subr.bf16.mxu0 0
    %147 = vmatpush2.bf16.msra.mxu0 0
    %148 = vmatprep.subr.bf16.mxu0 0
    %149 = vmatpush2.bf16.msra.mxu0 0
    %150 = vmatprep.mubr.bf16.mxu0 0
    %151 = vmatmul.mubr.bf16.gmra.mxu0 %v113
    %v152 = vpop.f32.mrf.mxu0
    %v153 = vadd.f32 0.0, %v152
    %v154 = vpop.f32.mrf.mxu0
    %v155 = vpop.f32.mrf.mxu0
    %v156 = vadd.f32 0.0, %v155
    %v157 = vpop.f32.mrf.mxu0
    %158 = vmatprep.mubr.bf16.mxu0 0
    %159 = vmatmul.mubr.bf16.gmra.mxu0 %v116
    %v160 = vpop.f32.mrf.mxu0
    %v161 = vadd.f32 0.0, %v160
    %v162 = vpop.f32.mrf.mxu0
    %v163 = vpop.f32.mrf.mxu0
    %v164 = vadd.f32 0.0, %v163
    %v165 = vpop.f32.mrf.mxu0
    %166 = vdwg.mxu0
    %s167 = sld [smem:[#allocation2]]
    %v168 = vstv %s167
    %v169 = vmul.f32 %v168, %v87
    %v170 = vmul.f32 %v168, %v88
    %v171 = vmul.f32 %v168, %v89
    %v172 = vmul.f32 %v168, %v90
    %174 = vset.pattern.permute.xlu0 0
    %175 = vperm.xlu0 %174, %v169
    %v176 = vpop.permute.xlu0 %175
    %179 = vset.pattern.permute.xlu0 0
    %180 = vperm.xlu0 %179, %v170
    %v181 = vpop.permute.xlu0 %180
    %184 = vset.pattern.permute.xlu0 0
    %185 = vperm.xlu0 %184, %v171
    %v186 = vpop.permute.xlu0 %185
    %189 = vset.pattern.permute.xlu0 0
    %190 = vperm.xlu0 %189, %v172
    %v191 = vpop.permute.xlu0 %190
    %v193 = vmul.f32 %v176, %v91
    %v194 = vmul.f32 %v181, %v92
    %v195 = vmul.f32 %v186, %v93
    %v196 = vmul.f32 %v191, %v94
    %v197 = vadd.f32 %v193, %v153
    %v198 = vadd.f32 %v194, %v156
    %v199 = vadd.f32 %v195, %v161
    %v200 = vadd.f32 %v196, %v164
    %v201 = vpack.c.bf16 %v198, %v197
    %v202 = vpack.c.bf16 %v200, %v199
    %v203 = vld [vmem:[#allocation7] sm:$0xf]
    %v204 = vld [vmem:[#allocation7 + $0x4] sm:$0xf]
    %v205 = vld [vmem:[#allocation7 + $0x8] sm:$0xf]
    %v206 = vld [vmem:[#allocation7 + $0xc] sm:$0xf]
    %v207 = vld [vmem:[#allocation7 + $0x10] sm:$0xf]
    %v208 = vld [vmem:[#allocation7 + $0x14] sm:$0xf]
    %v209 = vld [vmem:[#allocation7 + $0x18] sm:$0xf]
    %v210 = vld [vmem:[#allocation7 + $0x1c] sm:$0xf]
    %v211 = vld [vmem:[#allocation7 + $0x20] sm:$0xf]
    %v212 = vld [vmem:[#allocation7 + $0x24] sm:$0xf]
    %v213 = vld [vmem:[#allocation7 + $0x28] sm:$0xf]
    %v214 = vld [vmem:[#allocation7 + $0x2c] sm:$0xf]
    %v215 = vld [vmem:[#allocation7 + $0x30] sm:$0xf]
    %v216 = vld [vmem:[#allocation7 + $0x34] sm:$0xf]
    %v217 = vld [vmem:[#allocation7 + $0x38] sm:$0xf]
    %v218 = vld [vmem:[#allocation7 + $0x3c] sm:$0xf]
    %v219 = vld [vmem:[%s5] sm:$0x1]
    %v221 = vlaneseq
    %v222 = vshrl.u32 %v221, 7
    %v223 = vsub.s32 0, %v222
    %v224 = vrot.slane %v219, %v223
    %v242 = vunpack.c.l.b16 %v203
    %v243 = vunpack.c.l.b16 %v204
    %v244 = vunpack.c.l.b16 %v205
    %v245 = vunpack.c.l.b16 %v206
    %v246 = vunpack.c.l.b16 %v207
    %v247 = vunpack.c.l.b16 %v208
    %v248 = vunpack.c.l.b16 %v209
    %v249 = vunpack.c.l.b16 %v210
    %v250 = vunpack.c.l.b16 %v211
    %v251 = vunpack.c.l.b16 %v212
    %v252 = vunpack.c.l.b16 %v213
    %v253 = vunpack.c.l.b16 %v214
    %v254 = vunpack.c.l.b16 %v215
    %v255 = vunpack.c.l.b16 %v216
    %v256 = vunpack.c.l.b16 %v217
    %v257 = vunpack.c.l.b16 %v218
    %v258 = vpack.c.b16 %v243, %v242
    %v259 = vpack.c.b16 %v245, %v244
    %v260 = vpack.c.b16 %v247, %v246
    %v261 = vpack.c.b16 %v249, %v248
    %v262 = vpack.c.b16 %v251, %v250
    %v263 = vpack.c.b16 %v253, %v252
    %v264 = vpack.c.b16 %v255, %v254
    %v265 = vpack.c.b16 %v257, %v256
    %274 = vmatprep.subr.bf16.mxu0 0
    %275 = vmatpush1.bf16.msra.mxu0 %v265
    %276 = vmatprep.subr.bf16.mxu0 0
    %277 = vmatpush1.bf16.msra.mxu0 %v264
    %278 = vmatprep.subr.bf16.mxu0 0
    %279 = vmatpush1.bf16.msra.mxu0 %v263
    %280 = vmatprep.subr.bf16.mxu0 0
    %281 = vmatpush1.bf16.msra.mxu0 %v262
    %282 = vmatprep.subr.bf16.mxu0 0
    %283 = vmatpush1.bf16.msra.mxu0 %v261
    %284 = vmatprep.subr.bf16.mxu0 0
    %285 = vmatpush1.bf16.msra.mxu0 %v260
    %286 = vmatprep.subr.bf16.mxu0 0
    %287 = vmatpush1.bf16.msra.mxu0 %v259
    %288 = vmatprep.subr.bf16.mxu0 0
    %289 = vmatpush1.bf16.msra.mxu0 %v258
    %290 = vmatprep.subr.bf16.mxu0 0
    %291 = vmatpush2.bf16.msra.mxu0 0
    %292 = vmatprep.subr.bf16.mxu0 0
    %293 = vmatpush2.bf16.msra.mxu0 0
    %294 = vmatprep.subr.bf16.mxu0 0
    %295 = vmatpush2.bf16.msra.mxu0 0
    %296 = vmatprep.subr.bf16.mxu0 0
    %297 = vmatpush2.bf16.msra.mxu0 0
    %298 = vmatprep.subr.bf16.mxu0 0
    %299 = vmatpush2.bf16.msra.mxu0 0
    %300 = vmatprep.subr.bf16.mxu0 0
    %301 = vmatpush2.bf16.msra.mxu0 0
    %302 = vmatprep.subr.bf16.mxu0 0
    %303 = vmatpush2.bf16.msra.mxu0 0
    %304 = vmatprep.subr.bf16.mxu0 0
    %305 = vmatpush2.bf16.msra.mxu0 0
    %306 = vmatprep.mubr.bf16.mxu0 0
    %307 = vmatmul.mubr.bf16.gmra.mxu0 %v201
    %v308 = vpop.f32.mrf.mxu0
    %v309 = vadd.f32 %v224, %v308
    %v310 = vpop.f32.mrf.mxu0
    %v311 = vpop.f32.mrf.mxu0
    %v312 = vadd.f32 %v224, %v311
    %v313 = vpop.f32.mrf.mxu0
    %314 = vmatprep.mubr.bf16.mxu0 0
    %315 = vmatmul.mubr.bf16.gmra.mxu0 %v202
    %v316 = vpop.f32.mrf.mxu0
    %v317 = vadd.f32 %v224, %v316
    %v318 = vpop.f32.mrf.mxu0
    %v319 = vpop.f32.mrf.mxu0
    %v320 = vadd.f32 %v224, %v319
    %v321 = vpop.f32.mrf.mxu0
    %322 = vdwg.mxu0
    %v323 = vmax.f32 %v309, 0.0
    %v324 = vmax.f32 %v312, 0.0
    %v325 = vmax.f32 %v317, 0.0
    %v326 = vmax.f32 %v320, 0.0
    %v327 = vpack.c.bf16 %v324, %v323
    %v328 = vpack.c.bf16 %v326, %v325
    %v329 = vld [vmem:[#allocation9] sm:$0xf]
    %v330 = vld [vmem:[#allocation9 + $0x4] sm:$0xf]
    %v331 = vld [vmem:[#allocation9 + $0x8] sm:$0xf]
    %v332 = vld [vmem:[#allocation9 + $0xc] sm:$0xf]
    %v333 = vld [vmem:[#allocation9 + $0x10] sm:$0xf]
    %v334 = vld [vmem:[#allocation9 + $0x14] sm:$0xf]
    %v335 = vld [vmem:[#allocation9 + $0x18] sm:$0xf]
    %v336 = vld [vmem:[#allocation9 + $0x1c] sm:$0xf]
    %v337 = vld [vmem:[#allocation9 + $0x20] sm:$0xf]
    %v338 = vld [vmem:[#allocation9 + $0x24] sm:$0xf]
    %v339 = vld [vmem:[#allocation9 + $0x28] sm:$0xf]
    %v340 = vld [vmem:[#allocation9 + $0x2c] sm:$0xf]
    %v341 = vld [vmem:[#allocation9 + $0x30] sm:$0xf]
    %v342 = vld [vmem:[#allocation9 + $0x34] sm:$0xf]
    %v343 = vld [vmem:[#allocation9 + $0x38] sm:$0xf]
    %v344 = vld [vmem:[#allocation9 + $0x3c] sm:$0xf]
    %v345 = vld [vmem:[%s7] sm:$0x1]
    %v347 = vlaneseq
    %v348 = vshrl.u32 %v347, 7
    %v349 = vsub.s32 0, %v348
    %v350 = vrot.slane %v345, %v349
    %v368 = vunpack.c.l.b16 %v329
    %v369 = vunpack.c.l.b16 %v330
    %v370 = vunpack.c.l.b16 %v331
    %v371 = vunpack.c.l.b16 %v332
    %v372 = vunpack.c.l.b16 %v333
    %v373 = vunpack.c.l.b16 %v334
    %v374 = vunpack.c.l.b16 %v335
    %v375 = vunpack.c.l.b16 %v336
    %v376 = vunpack.c.l.b16 %v337
    %v377 = vunpack.c.l.b16 %v338
    %v378 = vunpack.c.l.b16 %v339
    %v379 = vunpack.c.l.b16 %v340
    %v380 = vunpack.c.l.b16 %v341
    %v381 = vunpack.c.l.b16 %v342
    %v382 = vunpack.c.l.b16 %v343
    %v383 = vunpack.c.l.b16 %v344
    %v384 = vpack.c.b16 %v369, %v368
    %v385 = vpack.c.b16 %v371, %v370
    %v386 = vpack.c.b16 %v373, %v372
    %v387 = vpack.c.b16 %v375, %v374
    %v388 = vpack.c.b16 %v377, %v376
    %v389 = vpack.c.b16 %v379, %v378
    %v390 = vpack.c.b16 %v381, %v380
    %v391 = vpack.c.b16 %v383, %v382
    %400 = vmatprep.subr.bf16.mxu0 0
    %401 = vmatpush1.bf16.msra.mxu0 %v391
    %402 = vmatprep.subr.bf16.mxu0 0
    %403 = vmatpush1.bf16.msra.mxu0 %v390
    %404 = vmatprep.subr.bf16.mxu0 0
    %405 = vmatpush1.bf16.msra.mxu0 %v389
    %406 = vmatprep.subr.bf16.mxu0 0
    %407 = vmatpush1.bf16.msra.mxu0 %v388
    %408 = vmatprep.subr.bf16.mxu0 0
    %409 = vmatpush1.bf16.msra.mxu0 %v387
    %410 = vmatprep.subr.bf16.mxu0 0
    %411 = vmatpush1.bf16.msra.mxu0 %v386
    %412 = vmatprep.subr.bf16.mxu0 0
    %413 = vmatpush1.bf16.msra.mxu0 %v385
    %414 = vmatprep.subr.bf16.mxu0 0
    %415 = vmatpush1.bf16.msra.mxu0 %v384
    %416 = vmatprep.subr.bf16.mxu0 0
    %417 = vmatpush2.bf16.msra.mxu0 0
    %418 = vmatprep.subr.bf16.mxu0 0
    %419 = vmatpush2.bf16.msra.mxu0 0
    %420 = vmatprep.subr.bf16.mxu0 0
    %421 = vmatpush2.bf16.msra.mxu0 0
    %422 = vmatprep.subr.bf16.mxu0 0
    %423 = vmatpush2.bf16.msra.mxu0 0
    %424 = vmatprep.subr.bf16.mxu0 0
    %425 = vmatpush2.bf16.msra.mxu0 0
    %426 = vmatprep.subr.bf16.mxu0 0
    %427 = vmatpush2.bf16.msra.mxu0 0
    %428 = vmatprep.subr.bf16.mxu0 0
    %429 = vmatpush2.bf16.msra.mxu0 0
    %430 = vmatprep.subr.bf16.mxu0 0
    %431 = vmatpush2.bf16.msra.mxu0 0
    %432 = vmatprep.mubr.bf16.mxu0 0
    %433 = vmatmul.mubr.bf16.gmra.mxu0 %v327
    %v434 = vpop.f32.mrf.mxu0
    %v435 = vadd.f32 %v350, %v434
    %v436 = vpop.f32.mrf.mxu0
    %v437 = vpop.f32.mrf.mxu0
    %v438 = vadd.f32 %v350, %v437
    %v439 = vpop.f32.mrf.mxu0
    %440 = vmatprep.mubr.bf16.mxu0 0
    %441 = vmatmul.mubr.bf16.gmra.mxu0 %v328
    %v442 = vpop.f32.mrf.mxu0
    %v443 = vadd.f32 %v350, %v442
    %v444 = vpop.f32.mrf.mxu0
    %v445 = vpop.f32.mrf.mxu0
    %v446 = vadd.f32 %v350, %v445
    %v447 = vpop.f32.mrf.mxu0
    %448 = vdwg.mxu0
    %v449 = vmax.f32 %v435, 0.0
    %v450 = vmax.f32 %v438, 0.0
    %v451 = vmax.f32 %v443, 0.0
    %v452 = vmax.f32 %v446, 0.0
    %v453 = vpack.c.bf16 %v450, %v449
    %v454 = vpack.c.bf16 %v452, %v451
    %455 = vmatprep.subr.bf16.mxu0 0
    %456 = vmatpush1.bf16.msra.mxu0 0
    %457 = vmatprep.subr.bf16.mxu0 0
    %458 = vmatpush1.bf16.msra.mxu0 0
    %459 = vmatprep.subr.bf16.mxu0 0
    %460 = vmatpush1.bf16.msra.mxu0 0
    %461 = vmatprep.subr.bf16.mxu0 0
    %462 = vmatpush1.bf16.msra.mxu0 0
    %463 = vmatprep.subr.bf16.mxu0 0
    %464 = vmatpush1.bf16.msra.mxu0 0
    %465 = vmatprep.subr.bf16.mxu0 0
    %466 = vmatpush1.bf16.msra.mxu0 0
    %467 = vmatprep.subr.bf16.mxu0 0
    %468 = vmatpush1.bf16.msra.mxu0 %v454
    %469 = vmatprep.subr.bf16.mxu0 0
    %470 = vmatpush1.bf16.msra.mxu0 %v453
    %471 = vmatprep.subr.bf16.mxu0 0
    %472 = vmatpush2.bf16.msra.mxu0 0
    %473 = vmatprep.subr.bf16.mxu0 0
    %474 = vmatpush2.bf16.msra.mxu0 0
    %475 = vmatprep.subr.bf16.mxu0 0
    %476 = vmatpush2.bf16.msra.mxu0 0
    %477 = vmatprep.subr.bf16.mxu0 0
    %478 = vmatpush2.bf16.msra.mxu0 0
    %479 = vmatprep.subr.bf16.mxu0 0
    %480 = vmatpush2.bf16.msra.mxu0 0
    %481 = vmatprep.subr.bf16.mxu0 0
    %482 = vmatpush2.bf16.msra.mxu0 0
    %483 = vmatprep.subr.bf16.mxu0 0
    %484 = vmatpush2.bf16.msra.mxu0 0
    %485 = vmatprep.subr.bf16.mxu0 0
    %486 = vmatpush2.bf16.msra.mxu0 0
    %487 = vmatprep.mubr.bf16.mxu0 0
    %488 = vmatmul.mubr.bf16.gmra.mxu0 %v113
    %v489 = vpop.f32.mrf.mxu0
    %v490 = vadd.f32 0.0, %v489
    %v491 = vpop.f32.mrf.mxu0
    %v492 = vpop.f32.mrf.mxu0
    %v493 = vadd.f32 0.0, %v492
    %v494 = vpop.f32.mrf.mxu0
    %495 = vmatprep.mubr.bf16.mxu0 0
    %496 = vmatmul.mubr.bf16.gmra.mxu0 %v116
    %v497 = vpop.f32.mrf.mxu0
    %v498 = vadd.f32 0.0, %v497
    %v499 = vpop.f32.mrf.mxu0
    %v500 = vpop.f32.mrf.mxu0
    %v501 = vadd.f32 0.0, %v500
    %v502 = vpop.f32.mrf.mxu0
    %503 = vdwg.mxu0
    %s504 = sld [smem:[#allocation2 + $0x1]]
    %v505 = vstv %s504
    %v506 = vmul.f32 %v505, %v87
    %v507 = vmul.f32 %v505, %v88
    %v508 = vmul.f32 %v505, %v89
    %v509 = vmul.f32 %v505, %v90
    %v510 = vunpack.c.l.bf16 %v453
    %v511 = vunpack.c.h.bf16 %v453
    %v512 = vunpack.c.l.bf16 %v454
    %v513 = vunpack.c.h.bf16 %v454
    %515 = vset.pattern.permute.xlu0 0
    %516 = vperm.xlu0 %515, %v506
    %v517 = vpop.permute.xlu0 %516
    %520 = vset.pattern.permute.xlu0 0
    %521 = vperm.xlu0 %520, %v507
    %v522 = vpop.permute.xlu0 %521
    %525 = vset.pattern.permute.xlu0 0
    %526 = vperm.xlu0 %525, %v508
    %v527 = vpop.permute.xlu0 %526
    %530 = vset.pattern.permute.xlu0 0
    %531 = vperm.xlu0 %530, %v509
    %v532 = vpop.permute.xlu0 %531
    %v534 = vmul.f32 %v517, %v510
    %v535 = vmul.f32 %v522, %v511
    %v536 = vmul.f32 %v527, %v512
    %v537 = vmul.f32 %v532, %v513
    %v538 = vadd.f32 %v534, %v490
    %v539 = vadd.f32 %v535, %v493
    %v540 = vadd.f32 %v536, %v498
    %v541 = vadd.f32 %v537, %v501
    %v542 = vpack.c.bf16 %v539, %v538
    %v543 = vpack.c.bf16 %v541, %v540
    %s544 = scalar_lea.vmem [#allocation7], 64
    %v545 = vld [vmem:[%s544] sm:$0xf]
    %v546 = vld [vmem:[%s544 + $0x4] sm:$0xf]
    %v547 = vld [vmem:[%s544 + $0x8] sm:$0xf]
    %v548 = vld [vmem:[%s544 + $0xc] sm:$0xf]
    %v549 = vld [vmem:[%s544 + $0x10] sm:$0xf]
    %v550 = vld [vmem:[%s544 + $0x14] sm:$0xf]
    %v551 = vld [vmem:[%s544 + $0x18] sm:$0xf]
    %v552 = vld [vmem:[%s544 + $0x1c] sm:$0xf]
    %v553 = vld [vmem:[%s544 + $0x20] sm:$0xf]
    %v554 = vld [vmem:[%s544 + $0x24] sm:$0xf]
    %v555 = vld [vmem:[%s544 + $0x28] sm:$0xf]
    %v556 = vld [vmem:[%s544 + $0x2c] sm:$0xf]
    %v557 = vld [vmem:[%s544 + $0x30] sm:$0xf]
    %v558 = vld [vmem:[%s544 + $0x34] sm:$0xf]
    %v559 = vld [vmem:[%s544 + $0x38] sm:$0xf]
    %v560 = vld [vmem:[%s544 + $0x3c] sm:$0xf]
    %s561 = scalar_lea.vmem %s5, 1
    %v562 = vld [vmem:[%s561] sm:$0x1]
    %v564 = vlaneseq
    %v565 = vshrl.u32 %v564, 7
    %v566 = vsub.s32 0, %v565
    %v567 = vrot.slane %v562, %v566
    %v585 = vunpack.c.l.b16 %v545
    %v586 = vunpack.c.l.b16 %v546
    %v587 = vunpack.c.l.b16 %v547
    %v588 = vunpack.c.l.b16 %v548
    %v589 = vunpack.c.l.b16 %v549
    %v590 = vunpack.c.l.b16 %v550
    %v591 = vunpack.c.l.b16 %v551
    %v592 = vunpack.c.l.b16 %v552
    %v593 = vunpack.c.l.b16 %v553
    %v594 = vunpack.c.l.b16 %v554
    %v595 = vunpack.c.l.b16 %v555
    %v596 = vunpack.c.l.b16 %v556
    %v597 = vunpack.c.l.b16 %v557
    %v598 = vunpack.c.l.b16 %v558
    %v599 = vunpack.c.l.b16 %v559
    %v600 = vunpack.c.l.b16 %v560
    %v601 = vpack.c.b16 %v586, %v585
    %v602 = vpack.c.b16 %v588, %v587
    %v603 = vpack.c.b16 %v590, %v589
    %v604 = vpack.c.b16 %v592, %v591
    %v605 = vpack.c.b16 %v594, %v593
    %v606 = vpack.c.b16 %v596, %v595
    %v607 = vpack.c.b16 %v598, %v597
    %v608 = vpack.c.b16 %v600, %v599
    %617 = vmatprep.subr.bf16.mxu0 0
    %618 = vmatpush1.bf16.msra.mxu0 %v608
    %619 = vmatprep.subr.bf16.mxu0 0
    %620 = vmatpush1.bf16.msra.mxu0 %v607
    %621 = vmatprep.subr.bf16.mxu0 0
    %622 = vmatpush1.bf16.msra.mxu0 %v606
    %623 = vmatprep.subr.bf16.mxu0 0
    %624 = vmatpush1.bf16.msra.mxu0 %v605
    %625 = vmatprep.subr.bf16.mxu0 0
    %626 = vmatpush1.bf16.msra.mxu0 %v604
    %627 = vmatprep.subr.bf16.mxu0 0
    %628 = vmatpush1.bf16.msra.mxu0 %v603
    %629 = vmatprep.subr.bf16.mxu0 0
    %630 = vmatpush1.bf16.msra.mxu0 %v602
    %631 = vmatprep.subr.bf16.mxu0 0
    %632 = vmatpush1.bf16.msra.mxu0 %v601
    %633 = vmatprep.subr.bf16.mxu0 0
    %634 = vmatpush2.bf16.msra.mxu0 0
    %635 = vmatprep.subr.bf16.mxu0 0
    %636 = vmatpush2.bf16.msra.mxu0 0
    %637 = vmatprep.subr.bf16.mxu0 0
    %638 = vmatpush2.bf16.msra.mxu0 0
    %639 = vmatprep.subr.bf16.mxu0 0
    %640 = vmatpush2.bf16.msra.mxu0 0
    %641 = vmatprep.subr.bf16.mxu0 0
    %642 = vmatpush2.bf16.msra.mxu0 0
    %643 = vmatprep.subr.bf16.mxu0 0
    %644 = vmatpush2.bf16.msra.mxu0 0
    %645 = vmatprep.subr.bf16.mxu0 0
    %646 = vmatpush2.bf16.msra.mxu0 0
    %647 = vmatprep.subr.bf16.mxu0 0
    %648 = vmatpush2.bf16.msra.mxu0 0
    %649 = vmatprep.mubr.bf16.mxu0 0
    %650 = vmatmul.mubr.bf16.gmra.mxu0 %v542
    %v651 = vpop.f32.mrf.mxu0
    %v652 = vadd.f32 %v567, %v651
    %v653 = vpop.f32.mrf.mxu0
    %v654 = vpop.f32.mrf.mxu0
    %v655 = vadd.f32 %v567, %v654
    %v656 = vpop.f32.mrf.mxu0
    %657 = vmatprep.mubr.bf16.mxu0 0
    %658 = vmatmul.mubr.bf16.gmra.mxu0 %v543
    %v659 = vpop.f32.mrf.mxu0
    %v660 = vadd.f32 %v567, %v659
    %v661 = vpop.f32.mrf.mxu0
    %v662 = vpop.f32.mrf.mxu0
    %v663 = vadd.f32 %v567, %v662
    %v664 = vpop.f32.mrf.mxu0
    %665 = vdwg.mxu0
    %v666 = vmax.f32 %v652, 0.0
    %v667 = vmax.f32 %v655, 0.0
    %v668 = vmax.f32 %v660, 0.0
    %v669 = vmax.f32 %v663, 0.0
    %v670 = vpack.c.bf16 %v667, %v666
    %v671 = vpack.c.bf16 %v669, %v668
    %s672 = scalar_lea.vmem [#allocation9], 64
    %v673 = vld [vmem:[%s672] sm:$0xf]
    %v674 = vld [vmem:[%s672 + $0x4] sm:$0xf]
    %v675 = vld [vmem:[%s672 + $0x8] sm:$0xf]
    %v676 = vld [vmem:[%s672 + $0xc] sm:$0xf]
    %v677 = vld [vmem:[%s672 + $0x10] sm:$0xf]
    %v678 = vld [vmem:[%s672 + $0x14] sm:$0xf]
    %v679 = vld [vmem:[%s672 + $0x18] sm:$0xf]
    %v680 = vld [vmem:[%s672 + $0x1c] sm:$0xf]
    %v681 = vld [vmem:[%s672 + $0x20] sm:$0xf]
    %v682 = vld [vmem:[%s672 + $0x24] sm:$0xf]
    %v683 = vld [vmem:[%s672 + $0x28] sm:$0xf]
    %v684 = vld [vmem:[%s672 + $0x2c] sm:$0xf]
    %v685 = vld [vmem:[%s672 + $0x30] sm:$0xf]
    %v686 = vld [vmem:[%s672 + $0x34] sm:$0xf]
    %v687 = vld [vmem:[%s672 + $0x38] sm:$0xf]
    %v688 = vld [vmem:[%s672 + $0x3c] sm:$0xf]
    %s689 = scalar_lea.vmem %s7, 1
    %v690 = vld [vmem:[%s689] sm:$0x1]
    %v692 = vlaneseq
    %v693 = vshrl.u32 %v692, 7
    %v694 = vsub.s32 0, %v693
    %v695 = vrot.slane %v690, %v694
    %v713 = vunpack.c.l.b16 %v673
    %v714 = vunpack.c.l.b16 %v674
    %v715 = vunpack.c.l.b16 %v675
    %v716 = vunpack.c.l.b16 %v676
    %v717 = vunpack.c.l.b16 %v677
    %v718 = vunpack.c.l.b16 %v678
    %v719 = vunpack.c.l.b16 %v679
    %v720 = vunpack.c.l.b16 %v680
    %v721 = vunpack.c.l.b16 %v681
    %v722 = vunpack.c.l.b16 %v682
    %v723 = vunpack.c.l.b16 %v683
    %v724 = vunpack.c.l.b16 %v684
    %v725 = vunpack.c.l.b16 %v685
    %v726 = vunpack.c.l.b16 %v686
    %v727 = vunpack.c.l.b16 %v687
    %v728 = vunpack.c.l.b16 %v688
    %v729 = vpack.c.b16 %v714, %v713
    %v730 = vpack.c.b16 %v716, %v715
    %v731 = vpack.c.b16 %v718, %v717
    %v732 = vpack.c.b16 %v720, %v719
    %v733 = vpack.c.b16 %v722, %v721
    %v734 = vpack.c.b16 %v724, %v723
    %v735 = vpack.c.b16 %v726, %v725
    %v736 = vpack.c.b16 %v728, %v727
    %745 = vmatprep.subr.bf16.mxu0 0
    %746 = vmatpush1.bf16.msra.mxu0 %v736
    %747 = vmatprep.subr.bf16.mxu0 0
    %748 = vmatpush1.bf16.msra.mxu0 %v735
    %749 = vmatprep.subr.bf16.mxu0 0
    %750 = vmatpush1.bf16.msra.mxu0 %v734
    %751 = vmatprep.subr.bf16.mxu0 0
    %752 = vmatpush1.bf16.msra.mxu0 %v733
    %753 = vmatprep.subr.bf16.mxu0 0
    %754 = vmatpush1.bf16.msra.mxu0 %v732
    %755 = vmatprep.subr.bf16.mxu0 0
    %756 = vmatpush1.bf16.msra.mxu0 %v731
    %757 = vmatprep.subr.bf16.mxu0 0
    %758 = vmatpush1.bf16.msra.mxu0 %v730
    %759 = vmatprep.subr.bf16.mxu0 0
    %760 = vmatpush1.bf16.msra.mxu0 %v729
    %761 = vmatprep.subr.bf16.mxu0 0
    %762 = vmatpush2.bf16.msra.mxu0 0
    %763 = vmatprep.subr.bf16.mxu0 0
    %764 = vmatpush2.bf16.msra.mxu0 0
    %765 = vmatprep.subr.bf16.mxu0 0
    %766 = vmatpush2.bf16.msra.mxu0 0
    %767 = vmatprep.subr.bf16.mxu0 0
    %768 = vmatpush2.bf16.msra.mxu0 0
    %769 = vmatprep.subr.bf16.mxu0 0
    %770 = vmatpush2.bf16.msra.mxu0 0
    %771 = vmatprep.subr.bf16.mxu0 0
    %772 = vmatpush2.bf16.msra.mxu0 0
    %773 = vmatprep.subr.bf16.mxu0 0
    %774 = vmatpush2.bf16.msra.mxu0 0
    %775 = vmatprep.subr.bf16.mxu0 0
    %776 = vmatpush2.bf16.msra.mxu0 0
    %777 = vmatprep.mubr.bf16.mxu0 0
    %778 = vmatmul.mubr.bf16.gmra.mxu0 %v670
    %v779 = vpop.f32.mrf.mxu0
    %v780 = vadd.f32 %v695, %v779
    %v781 = vpop.f32.mrf.mxu0
    %v782 = vpop.f32.mrf.mxu0
    %v783 = vadd.f32 %v695, %v782
    %v784 = vpop.f32.mrf.mxu0
    %785 = vmatprep.mubr.bf16.mxu0 0
    %786 = vmatmul.mubr.bf16.gmra.mxu0 %v671
    %v787 = vpop.f32.mrf.mxu0
    %v788 = vadd.f32 %v695, %v787
    %v789 = vpop.f32.mrf.mxu0
    %v790 = vpop.f32.mrf.mxu0
    %v791 = vadd.f32 %v695, %v790
    %v792 = vpop.f32.mrf.mxu0
    %793 = vdwg.mxu0
    %v794 = vmax.f32 %v780, 0.0
    %v795 = vmax.f32 %v783, 0.0
    %v796 = vmax.f32 %v788, 0.0
    %v797 = vmax.f32 %v791, 0.0
    %v798 = vmul.f32 %v794, 2.0
    %v799 = vmul.f32 %v795, 2.0
    %v800 = vmul.f32 %v796, 2.0
    %v801 = vmul.f32 %v797, 2.0
    %v802 = vadd.f32 %v449, %v798
    %v803 = vadd.f32 %v450, %v799
    %v804 = vadd.f32 %v451, %v800
    %v805 = vadd.f32 %v452, %v801
    %806 = vst [vmem:[#allocation10] sm:$0xff] %v802
    %807 = vst [vmem:[#allocation10 + $0x8] sm:$0xff] %v803
    %808 = vst [vmem:[#allocation10 + $0x10] sm:$0xff] %v804
    %809 = vst [vmem:[#allocation10 + $0x18] sm:$0xff] %v805
    // Predicated region
    $region50: #{tpu_custom_call.1} parent=1 // pred_check
      _
    $region51: #{tpu_custom_call.1} parent=1 // pred_check_branch
      %811 = sbr.rel (0) target = $region53
    $region52: #{tpu_custom_call.1} parent=1 // pred_region
      %s813 = ssub.s32 512, 512
      %814 = vsyncadd [#allocation4], %s813
      %s815 = sshll.u32 [#allocation10], 4
      %s816 = int_to_ptr.vmem [resolvable:$true] %s815
      %821 = dma.vmem_to_hbm [thread:$0]  %s816, 512, %s8, [#allocation4], 128, 128, 8
    $region53: #{tpu_custom_call.1} parent=1 // pred_fallthru
      _
    // Predicated region
    $region54: #{tpu_custom_call.1} parent=1 // pred_check
      _
    $region55: #{tpu_custom_call.1} parent=1 // pred_check_branch
      %823 = sbr.rel (0) target = $region57
    $region56: #{tpu_custom_call.1} parent=1 // pred_region
      %824 = dma.done [#allocation4], 512
    $region57: #{tpu_custom_call.1} parent=1 // pred_fallthru
      _
    %825 = vsyncpa [#allocation3], 1
    %826 = vsyncpa [#allocation8], 1
    %827 = vsyncpa [#allocation4], 1
    %828 = vsyncpa [#allocation5], 1

</llo_original>
